<compile_context>
chip_gen: v5e
topology: v5e:2x2
jax: 0.10.0
libtpu: 0.0.40
codegen_flags: <defaults>
</compile_context>

<pallas_src>
import functools

import jax
import jax.numpy as jnp
from jax.experimental import pallas as pl
from jax.experimental.pallas import tpu as pltpu


def _round_up(v, m):
    return (v + m - 1) // m * m


# ----------------------------- kernels ------------------------------------ #

def _bce_masked_kernel(x_ref, t_ref, m_ref, out_ref, num_ref, den_ref):
    k = pl.program_id(1)

    @pl.when(k == 0)
    def _init():
        num_ref[...] = jnp.zeros_like(num_ref)
        den_ref[...] = jnp.zeros_like(den_ref)

    x = x_ref[...].astype(jnp.float32)
    t = t_ref[...].astype(jnp.float32)
    m = m_ref[...].astype(jnp.float32)
    # Numerically stable BCE-with-logits: max(x,0) - x*t + log1p(exp(-|x|))
    loss = jnp.maximum(x, 0.0) - x * t + jnp.log1p(jnp.exp(-jnp.abs(x)))
    num_ref[...] += jnp.sum(loss * m, axis=-1, keepdims=True)
    den_ref[...] += jnp.sum(m, axis=-1, keepdims=True)

    @pl.when(k == pl.num_programs(1) - 1)
    def _finalize():
        out_ref[...] = num_ref[...] / (den_ref[...] + 1e-8)


def _bce_unmasked_kernel(x_ref, t_ref, out_ref, num_ref, *,
                         cols, col_tile, cols_padded):
    k = pl.program_id(1)

    @pl.when(k == 0)
    def _init():
        num_ref[...] = jnp.zeros_like(num_ref)

    x = x_ref[...].astype(jnp.float32)
    t = t_ref[...].astype(jnp.float32)
    loss = jnp.maximum(x, 0.0) - x * t + jnp.log1p(jnp.exp(-jnp.abs(x)))
    if cols_padded != cols:
        # Exclude zero-padded columns from the spatial sum (cheap VPU op).
        col_idx = jax.lax.broadcasted_iota(jnp.int32, loss.shape, 1) + k * col_tile
        loss = jnp.where(col_idx < cols, loss, 0.0)
    num_ref[...] += jnp.sum(loss, axis=-1, keepdims=True)

    @pl.when(k == pl.num_programs(1) - 1)
    def _finalize():
        out_ref[...] = num_ref[...] * jnp.float32(1.0 / cols)


# ----------------------------- wrapper ------------------------------------ #

_TARGET_BLOCK_ELEMS = 512 * 1024            # ~2 MiB of f32 per input block
_MAX_COL_TILE = _TARGET_BLOCK_ELEMS // 8    # keep row_tile >= 8


def _pick_tiles(rows, cols):
    col_tile = min(_round_up(cols, 128), _MAX_COL_TILE)
    row_tile = (_TARGET_BLOCK_ELEMS // col_tile) // 8 * 8
    row_tile = max(8, min(row_tile, _round_up(rows, 8)))
    return row_tile, col_tile


def _maybe_narrow(a):
    # 0/1-valued bool / integer side-inputs stream as bf16 (exact) to halve
    # their HBM bytes; float inputs keep their dtype to preserve semantics.
    if a.dtype == jnp.bool_ or jnp.issubdtype(a.dtype, jnp.integer):
        return a.astype(jnp.bfloat16)
    return a


def bce_with_logits_mask_loss(x, target, mask=None, reduction='mean'):
    """Pallas implementation of BCEWithLogitsMaskLoss.forward."""
    if reduction not in ('mean', 'sum'):
        raise NotImplementedError(reduction)

    n, c = x.shape[0], x.shape[1]
    rows = n * c
    cols = 1
    for d in x.shape[2:]:
        cols *= d

    x2 = x.reshape(rows, cols)
    t2 = _maybe_narrow(target).reshape(rows, cols)
    has_mask = mask is not None
    inputs = [x2, t2]
    if has_mask:
        inputs.append(_maybe_narrow(mask).reshape(rows, cols))

    row_tile, col_tile = _pick_tiles(rows, cols)
    rows_p = _round_up(rows, row_tile)
    cols_p = _round_up(cols, col_tile)
    if rows_p != rows or cols_p != cols:
        inputs = [jnp.pad(a, ((0, rows_p - rows), (0, cols_p - cols)))
                  for a in inputs]

    grid = (rows_p // row_tile, cols_p // col_tile)
    in_spec = pl.BlockSpec((row_tile, col_tile), lambda i, k: (i, k))

    if has_mask:
        kernel = _bce_masked_kernel
        scratch = [pltpu.VMEM((row_tile, 1), jnp.float32),
                   pltpu.VMEM((row_tile, 1), jnp.float32)]
    else:
        kernel = functools.partial(_bce_unmasked_kernel, cols=cols,
                                   col_tile=col_tile, cols_padded=cols_p)
        scratch = [pltpu.VMEM((row_tile, 1), jnp.float32)]

    # Explicit scoped-VMEM budget (v5e default is only 16 MiB); stays well
    # under v7x's 64 MiB physical VMEM since blocks are capped at ~2 MiB each.
    block_bytes = sum(row_tile * col_tile * a.dtype.itemsize for a in inputs)
    vmem_limit = int(max(32 << 20, min(3 * block_bytes + (4 << 20), 64 << 20)))

    per_row = pl.pallas_call(
        kernel,
        out_shape=jax.ShapeDtypeStruct((rows_p, 1), jnp.float32),
        grid_spec=pltpu.PrefetchScalarGridSpec(
            num_scalar_prefetch=0,
            grid=grid,
            in_specs=[in_spec] * len(inputs),
            out_specs=pl.BlockSpec((row_tile, 1), lambda i, k: (i, 0)),
            scratch_shapes=scratch,
        ),
        compiler_params=pltpu.CompilerParams(
            dimension_semantics=("parallel", "arbitrary"),
            vmem_limit_bytes=vmem_limit),
    )(*inputs)

    per_row = per_row[:rows, 0]                     # drop padded rows
    return jnp.mean(per_row) if reduction == 'mean' else jnp.sum(per_row)


# ----------------------------- reference ---------------------------------- #

def _reference(x, target, mask=None, reduction='mean'):
    """Plain-JAX reference mirroring the PyTorch module."""
    x = x.astype(jnp.float32)
    t = target.astype(jnp.float32)
    loss = jnp.maximum(x, 0.0) - x * t + jnp.log1p(jnp.exp(-jnp.abs(x)))
    axes = tuple(range(2, x.ndim))
    if mask is not None:
        m = mask.astype(jnp.float32)
        loss = jnp.sum(loss * m, axis=axes) / (jnp.sum(m, axis=axes) + 1e-8)
    else:
        loss = jnp.mean(loss, axis=axes)
    return jnp.mean(loss) if reduction == 'mean' else jnp.sum(loss)


if __name__ == "__main__":
    # BCEWithLogitsMaskLoss has no learnable parameters.
    key = jax.random.PRNGKey(0)
    k1, k2, k3, k4, k5, k6 = jax.random.split(key, 6)

    # Case 1: aligned NCHW shape, masked + unmasked, reduction='mean'.
    B, C, H, W = 2, 4, 16, 16
    x = jax.random.normal(k1, (B, C, H, W), dtype=jnp.float32)
    tgt = jax.random.bernoulli(k2, 0.5, (B, C, H, W)).astype(jnp.float32)
    msk = jax.random.bernoulli(k3, 0.7, (B, C, H, W)).astype(jnp.float32)

    o = jax.block_until_ready(bce_with_logits_mask_loss(x, tgt, msk, 'mean'))
    r = _reference(x, tgt, msk, 'mean')
    assert jnp.allclose(o, r, rtol=1e-5, atol=1e-5), (o, r)

    o = jax.block_until_ready(bce_with_logits_mask_loss(x, tgt, None, 'mean'))
    r = _reference(x, tgt, None, 'mean')
    assert jnp.allclose(o, r, rtol=1e-5, atol=1e-5), (o, r)

    # Case 2: unaligned shape (rows=6, cols=850) exercising row/col padding,
    # bool mask (streamed as bf16), reduction='sum', and the unmasked
    # valid-column path.
    B2, C2, H2, W2 = 2, 3, 17, 50
    x2 = jax.random.normal(k4, (B2, C2, H2, W2), dtype=jnp.float32)
    tgt2 = jax.random.bernoulli(k5, 0.5, (B2, C2, H2, W2)).astype(jnp.float32)
    msk2_bool = jax.random.bernoulli(k6, 0.6, (B2, C2, H2, W2))

    o = jax.block_until_ready(bce_with_logits_mask_loss(x2, tgt2, msk2_bool, 'sum'))
    r = _reference(x2, tgt2, msk2_bool.astype(jnp.float32), 'sum')
    assert jnp.allclose(o, r, rtol=1e-5, atol=1e-5), (o, r)

    o = jax.block_until_ready(bce_with_logits_mask_loss(x2, tgt2, None, 'mean'))
    r = _reference(x2, tgt2, None, 'mean')
    assert jnp.allclose(o, r, rtol=1e-5, atol=1e-5), (o, r)

    print("KERNEL_OK")
</pallas_src>

<mosaic_0001>
module attributes {stable_mosaic.version = 11 : i64} {
  func.func @_bce_masked_kernel(%arg0: i32, %arg1: i32, %arg2: memref<8x256xf32, #tpu.memory_space<vmem>>, %arg3: memref<8x256xf32, #tpu.memory_space<vmem>>, %arg4: memref<8x256xf32, #tpu.memory_space<vmem>>, %arg5: memref<8x1xf32, #tpu.memory_space<vmem>>, %arg6: memref<8x1xf32, #tpu.memory_space<vmem>>, %arg7: memref<8x1xf32, #tpu.memory_space<vmem>>) attributes {dimension_semantics = [#tpu.dimension_semantics<parallel>, #tpu.dimension_semantics<arbitrary>], iteration_bounds = array<i64: 1, 1>, scalar_prefetch = 0 : i64, scratch_operands = 2 : i64, tpu.core_type = #tpu.core_type<tc>, window_params = [{transform_indices = @transform_0, window_bounds = array<i64: 8, 256>}, {transform_indices = @transform_1, window_bounds = array<i64: 8, 256>}, {transform_indices = @transform_2, window_bounds = array<i64: 8, 256>}, {transform_indices = @transform_3, window_bounds = array<i64: 8, 1>}]} {
    %c0_i32 = arith.constant 0 : i32
    %0 = arith.cmpi eq, %arg1, %c0_i32 : i32
    %1 = arith.extui %0 : i1 to i32
    %c0_i32_0 = arith.constant 0 : i32
    %2 = arith.cmpi ne, %1, %c0_i32_0 : i32
    scf.if %2 {
      %cst_19 = arith.constant 0.000000e+00 : f32
      %30 = vector.broadcast %cst_19 : f32 to vector<8x1xf32>
      %c0_20 = arith.constant 0 : index
      %c0_21 = arith.constant 0 : index
      %31 = vector.load %arg6[%c0_20, %c0_21] : memref<8x1xf32, #tpu.memory_space<vmem>>, vector<8x1xf32>
      tpu.vector_store %arg6[%c0_20, %c0_21], %30 {strides = array<i32>} : memref<8x1xf32, #tpu.memory_space<vmem>>, vector<8x1xf32>,
      %cst_22 = arith.constant 0.000000e+00 : f32
      %32 = vector.broadcast %cst_22 : f32 to vector<8x1xf32>
      %c0_23 = arith.constant 0 : index
      %c0_24 = arith.constant 0 : index
      %33 = vector.load %arg7[%c0_23, %c0_24] : memref<8x1xf32, #tpu.memory_space<vmem>>, vector<8x1xf32>
      tpu.vector_store %arg7[%c0_23, %c0_24], %32 {strides = array<i32>} : memref<8x1xf32, #tpu.memory_space<vmem>>, vector<8x1xf32>,
    } else {
    }
    %c0 = arith.constant 0 : index
    %c0_1 = arith.constant 0 : index
    %3 = vector.load %arg2[%c0, %c0_1] : memref<8x256xf32, #tpu.memory_space<vmem>>, vector<8x256xf32>
    %c0_2 = arith.constant 0 : index
    %c0_3 = arith.constant 0 : index
    %4 = vector.load %arg3[%c0_2, %c0_3] : memref<8x256xf32, #tpu.memory_space<vmem>>, vector<8x256xf32>
    %c0_4 = arith.constant 0 : index
    %c0_5 = arith.constant 0 : index
    %5 = vector.load %arg4[%c0_4, %c0_5] : memref<8x256xf32, #tpu.memory_space<vmem>>, vector<8x256xf32>
    %cst = arith.constant 0.000000e+00 : f32
    %6 = vector.broadcast %cst : f32 to vector<8x256xf32>
    %7 = arith.maximumf %3, %6 : vector<8x256xf32>
    %8 = arith.mulf %3, %4 : vector<8x256xf32>
    %9 = arith.subf %7, %8 : vector<8x256xf32>
    %10 = math.absf %3 : vector<8x256xf32>
    %cst_6 = arith.constant 0.000000e+00 : f32
    %11 = vector.broadcast %cst_6 : f32 to vector<8x256xf32>
    %12 = arith.subf %11, %10 : vector<8x256xf32>
    %13 = math.exp %12 : vector<8x256xf32>
    %14 = math.log1p %13 : vector<8x256xf32>
    %15 = arith.addf %9, %14 : vector<8x256xf32>
    %c0_7 = arith.constant 0 : index
    %c0_8 = arith.constant 0 : index
    %16 = vector.load %arg6[%c0_7, %c0_8] : memref<8x1xf32, #tpu.memory_space<vmem>>, vector<8x1xf32>
    %17 = arith.mulf %15, %5 : vector<8x256xf32>
    %cst_9 = arith.constant dense<0.000000e+00> : vector<8xf32>
    %18 = vector.multi_reduction <add>, %17, %cst_9 [1] : vector<8x256xf32> to vector<8xf32>
    %19 = vector.shape_cast %18 : vector<8xf32> to vector<8x1xf32>
    %20 = arith.addf %16, %19 : vector<8x1xf32>
    %c0_10 = arith.constant 0 : index
    %c0_11 = arith.constant 0 : index
    %21 = vector.load %arg6[%c0_10, %c0_11] : memref<8x1xf32, #tpu.memory_space<vmem>>, vector<8x1xf32>
    tpu.vector_store %arg6[%c0_10, %c0_11], %20 {strides = array<i32>} : memref<8x1xf32, #tpu.memory_space<vmem>>, vector<8x1xf32>,
    %c0_12 = arith.constant 0 : index
    %c0_13 = arith.constant 0 : index
    %22 = vector.load %arg7[%c0_12, %c0_13] : memref<8x1xf32, #tpu.memory_space<vmem>>, vector<8x1xf32>
    %cst_14 = arith.constant dense<0.000000e+00> : vector<8xf32>
    %23 = vector.multi_reduction <add>, %5, %cst_14 [1] : vector<8x256xf32> to vector<8xf32>
    %24 = vector.shape_cast %23 : vector<8xf32> to vector<8x1xf32>
    %25 = arith.addf %22, %24 : vector<8x1xf32>
    %c0_15 = arith.constant 0 : index
    %c0_16 = arith.constant 0 : index
    %26 = vector.load %arg7[%c0_15, %c0_16] : memref<8x1xf32, #tpu.memory_space<vmem>>, vector<8x1xf32>
    tpu.vector_store %arg7[%c0_15, %c0_16], %25 {strides = array<i32>} : memref<8x1xf32, #tpu.memory_space<vmem>>, vector<8x1xf32>,
    %c0_i32_17 = arith.constant 0 : i32
    %27 = arith.cmpi eq, %arg1, %c0_i32_17 : i32
    %28 = arith.extui %27 : i1 to i32
    %c0_i32_18 = arith.constant 0 : i32
    %29 = arith.cmpi ne, %28, %c0_i32_18 : i32
    scf.if %29 {
      %c0_19 = arith.constant 0 : index
      %c0_20 = arith.constant 0 : index
      %30 = vector.load %arg6[%c0_19, %c0_20] : memref<8x1xf32, #tpu.memory_space<vmem>>, vector<8x1xf32>
      %c0_21 = arith.constant 0 : index
      %c0_22 = arith.constant 0 : index
      %31 = vector.load %arg7[%c0_21, %c0_22] : memref<8x1xf32, #tpu.memory_space<vmem>>, vector<8x1xf32>
      %cst_23 = arith.constant 9.99999993E-9 : f32
      %32 = vector.broadcast %cst_23 : f32 to vector<8x1xf32>
      %33 = arith.addf %31, %32 : vector<8x1xf32>
      %34 = arith.divf %30, %33 : vector<8x1xf32>
      %c0_24 = arith.constant 0 : index
      %c0_25 = arith.constant 0 : index
      %35 = vector.load %arg5[%c0_24, %c0_25] : memref<8x1xf32, #tpu.memory_space<vmem>>, vector<8x1xf32>
      tpu.vector_store %arg5[%c0_24, %c0_25], %34 {strides = array<i32>} : memref<8x1xf32, #tpu.memory_space<vmem>>, vector<8x1xf32>,
    } else {
    }
    return
  }
  func.func @transform_0(%arg0: i32, %arg1: i32) -> (i32, i32) {
    %c0_i32 = arith.constant 0 : i32
    return %arg0, %arg1 : i32, i32
  }
  func.func @transform_1(%arg0: i32, %arg1: i32) -> (i32, i32) {
    %c0_i32 = arith.constant 0 : i32
    return %arg0, %arg1 : i32, i32
  }
  func.func @transform_2(%arg0: i32, %arg1: i32) -> (i32, i32) {
    %c0_i32 = arith.constant 0 : i32
    return %arg0, %arg1 : i32, i32
  }
  func.func @transform_3(%arg0: i32, %arg1: i32) -> (i32, i32) {
    %c0_i32 = arith.constant 0 : i32
    %c0_i32_0 = arith.constant 0 : i32
    return %arg0, %c0_i32 : i32, i32
  }
}

</mosaic_0001>

<llo_original>
// kernel: tpu_custom_call.1
$region0: #{tpu_custom_call.1}
  #allocation0 [shape = 'u32[]', space=smem, size = 0x4, offset = 0x4, fixed_abs, tag = 'smem constant byte address 0x4 - core index']
  #allocation1 [shape = 'u32[72,128]{1,0:T(1,128)}', space=vmem, size = 0x9000, scoped, tag = 'internal scratch']
  #allocation2 [shape = 'f32[8,1]{1,0:T(8,128)}', space=vmem, size = 0x1000, scoped, tag = 'scratch operand']
  #allocation3 [shape = 'f32[8,1]{1,0:T(8,128)}', space=vmem, size = 0x1000, scoped, tag = 'scratch operand']
  %s0 = inlined_call_operand.hbm [shape: f32[8,256], index: 0, kind: input, shape index: {}]
  %s1 = inlined_call_operand.hbm [shape: f32[8,256], index: 1, kind: input, shape index: {}]
  %s2 = inlined_call_operand.hbm [shape: f32[8,256], index: 2, kind: input, shape index: {}]
  %s3 = inlined_call_operand.vmem [shape: f32[8,1], index: 3, kind: output, shape index: {}]
  %s4 = sld [smem:[#allocation0]]
  $region42: #{tpu_custom_call.1} parent=0
    _
  %s6 = ssub.s32 1, %s4
  %s7 = scalar_select 0, %s6, %s4
  $region1: #{tpu_custom_call.1} parent=0
    #allocation4 [shape = 'u8[8192]{0}', space=vmem, size = 0x2000, scoped, tag = 'input window, operand 0, single buffered']
    #allocation5 [shape = 's32[1]{0}', space=sflag, size = 0x4, scoped, tag = 'scoped memory for tpu_custom_call.1']
    #allocation6 [shape = 'u8[8192]{0}', space=vmem, size = 0x2000, scoped, tag = 'input window, operand 1, single buffered']
    #allocation7 [shape = 's32[1]{0}', space=sflag, size = 0x4, scoped, tag = 'scoped memory for tpu_custom_call.1']
    #allocation8 [shape = 'u8[8192]{0}', space=vmem, size = 0x2000, scoped, tag = 'input window, operand 2, single buffered']
    %8 = vsyncpa [#allocation5], 0
    %9 = vsyncpa [#allocation7], 0
    // Predicated region
    $region2: #{tpu_custom_call.1} parent=1 // pred_check
      _
    $region3: #{tpu_custom_call.1} parent=1 // pred_check_branch
      %11 = sbr.rel (0) target = $region5
    $region4: #{tpu_custom_call.1} parent=1 // pred_region
      %13 = vsyncadd [#allocation5], 0
      %s15 = sshll.u32 %s0, 4
      %s16 = int_to_ptr.hbm [resolvable:$true] %s15
      %s17 = sshll.u32 [#allocation4], 4
      %s18 = int_to_ptr.vmem [resolvable:$true] %s17
      %20 = dma.hbm_to_vmem [thread:$0]  %s16, 256, %s18, [#allocation5]
    $region5: #{tpu_custom_call.1} parent=1 // pred_fallthru
      _
    // Predicated region
    $region6: #{tpu_custom_call.1} parent=1 // pred_check
      _
    $region7: #{tpu_custom_call.1} parent=1 // pred_check_branch
      %22 = sbr.rel (0) target = $region9
    $region8: #{tpu_custom_call.1} parent=1 // pred_region
      %24 = vsyncadd [#allocation7], 0
      %s26 = sshll.u32 %s1, 4
      %s27 = int_to_ptr.hbm [resolvable:$true] %s26
      %s28 = sshll.u32 [#allocation6], 4
      %s29 = int_to_ptr.vmem [resolvable:$true] %s28
      %31 = dma.hbm_to_vmem [thread:$0]  %s27, 256, %s29, [#allocation7]
    $region9: #{tpu_custom_call.1} parent=1 // pred_fallthru
      _
    // Predicated region
    $region10: #{tpu_custom_call.1} parent=1 // pred_check
      _
    $region11: #{tpu_custom_call.1} parent=1 // pred_check_branch
      %33 = sbr.rel (0) target = $region13
    $region12: #{tpu_custom_call.1} parent=1 // pred_region
      %35 = vsyncadd [#allocation7], 0
      %s37 = sshll.u32 %s2, 4
      %s38 = int_to_ptr.hbm [resolvable:$true] %s37
      %s39 = sshll.u32 [#allocation8], 4
      %s40 = int_to_ptr.vmem [resolvable:$true] %s39
      %42 = dma.hbm_to_vmem [thread:$0]  %s38, 256, %s40, [#allocation7]
    $region13: #{tpu_custom_call.1} parent=1 // pred_fallthru
      _
    // Predicated region
    $region14: #{tpu_custom_call.1} parent=1 // pred_check
      _
    $region15: #{tpu_custom_call.1} parent=1 // pred_check_branch
      %44 = sbr.rel (0) target = $region17
    $region16: #{tpu_custom_call.1} parent=1 // pred_region
      %46 = dma.done [#allocation5], 256
    $region17: #{tpu_custom_call.1} parent=1 // pred_fallthru
      _
    // Predicated region
    $region18: #{tpu_custom_call.1} parent=1 // pred_check
      _
    $region19: #{tpu_custom_call.1} parent=1 // pred_check_branch
      %48 = sbr.rel (0) target = $region21
    $region20: #{tpu_custom_call.1} parent=1 // pred_region
      %50 = dma.done [#allocation7], 256
    $region21: #{tpu_custom_call.1} parent=1 // pred_fallthru
      _
    // Predicated region
    $region22: #{tpu_custom_call.1} parent=1 // pred_check
      _
    $region23: #{tpu_custom_call.1} parent=1 // pred_check_branch
      %52 = sbr.rel (0) target = $region25
    $region24: #{tpu_custom_call.1} parent=1 // pred_region
      %54 = dma.done [#allocation7], 256
    $region25: #{tpu_custom_call.1} parent=1 // pred_fallthru
      _
    %p55 = scmp.eq.s32.totalorder 0, 0
    // Predicated region
    $region26: #{tpu_custom_call.1} parent=1 // pred_check
      %p56 = pneg %p55
    $region27: #{tpu_custom_call.1} parent=1 // pred_check_branch
      %58 = sbr.rel (%p56) target = $region29
    $region28: #{tpu_custom_call.1} parent=1 // pred_region
      %vm59 = vcmask 7168
      %60 = vst.msk [vmem:[#allocation2] sm:$0xff] %vm59, 0.0
      %61 = vst.msk [vmem:[#allocation3] sm:$0xff] %vm59, 0.0
    $region29: #{tpu_custom_call.1} parent=1 // pred_fallthru
      _
    %v62 = vld [vmem:[#allocation4] sm:$0xff]
    %v63 = vld [vmem:[#allocation4 + $0x8] sm:$0xff]
    %v64 = vld [vmem:[#allocation6] sm:$0xff]
    %v65 = vld [vmem:[#allocation6 + $0x8] sm:$0xff]
    %v66 = vld [vmem:[#allocation8] sm:$0xff]
    %v67 = vld [vmem:[#allocation8 + $0x8] sm:$0xff]
    %v68 = vmax.f32 %v62, 0.0
    %v69 = vmax.f32 %v63, 0.0
    %v70 = vmul.f32 %v62, %v64
    %v71 = vmul.f32 %v63, %v65
    %v72 = vsub.f32 %v68, %v70
    %v73 = vsub.f32 %v69, %v71
    %v74 = vand.u32 2147483647, %v62
    %v75 = vand.u32 2147483647, %v63
    %v76 = vsub.f32 0.0, %v74
    %v77 = vsub.f32 0.0, %v75
    %v78 = vmul.f32 %v76, 1.442695
    %v79 = vpow.pop %v78
    %v80 = vmul.f32 %v77, 1.442695
    %v81 = vpow.pop %v80
    %v82 = vadd.f32 %v79, 1.0
    %v83 = vlog2.pop %v82
    %v84 = vmul.f32 %v83, 0.6931472
    %v85 = vmul.f32 -0.5, %v79
    %v86 = vadd.f32 %v85, 1.0
    %v87 = vmul.f32 %v86, %v79
    %v88 = vand.u32 2147483647, %v79
    %vm89 = vcmp.lt.f32.partialorder %v88, 0.0004427343
    %v90 = vsel %vm89, %v87, %v84
    %v91 = vadd.f32 %v81, 1.0
    %v92 = vlog2.pop %v91
    %v93 = vmul.f32 %v92, 0.6931472
    %v94 = vmul.f32 -0.5, %v81
    %v95 = vadd.f32 %v94, 1.0
    %v96 = vmul.f32 %v95, %v81
    %v97 = vand.u32 2147483647, %v81
    %vm98 = vcmp.lt.f32.partialorder %v97, 0.0004427343
    %v99 = vsel %vm98, %v96, %v93
    %v100 = vadd.f32 %v72, %v90
    %v101 = vadd.f32 %v73, %v99
    %v102 = vld [vmem:[#allocation2] sm:$0xff]
    %v103 = vmul.f32 %v100, %v66
    %v104 = vmul.f32 %v101, %v67
    %v105 = vadd.f32 %v103, %v104
    %106 = vadd.xlane.f32.xlu0 %v105
    %v107 = vpop.xlane.xlu0 %106
    %v108 = vadd.f32 %v102, %v107
    %vm109 = vcmask 7168
    %110 = vst.msk [vmem:[#allocation2] sm:$0xff] %vm109, %v108
    %v111 = vld [vmem:[#allocation3] sm:$0xff]
    %v112 = vadd.f32 %v66, %v67
    %113 = vadd.xlane.f32.xlu0 %v112
    %v114 = vpop.xlane.xlu0 %113
    %v115 = vadd.f32 %v111, %v114
    %116 = vst.msk [vmem:[#allocation3] sm:$0xff] %vm109, %v115
    // Predicated region
    $region30: #{tpu_custom_call.1} parent=1 // pred_check
      %p117 = pneg %p55
    $region31: #{tpu_custom_call.1} parent=1 // pred_check_branch
      %119 = sbr.rel (%p117) target = $region33
    $region32: #{tpu_custom_call.1} parent=1 // pred_region
      %v120 = vld [vmem:[#allocation2] sm:$0xff]
      %v121 = vld [vmem:[#allocation3] sm:$0xff]
      %v122 = vadd.f32 %v121, 1e-08
      %v123 = vrcp.pop %v122
      %v124 = vmul.f32 %v122, %v123
      %v125 = vsub.f32 1.0, %v124
      %v126 = vmul.f32 %v123, %v125
      %v127 = vadd.f32 %v123, %v126
      %vm128 = vweird.f32 %v122
      %vm129 = vweird.f32 %v123
      %vm130 = vmor %vm128, %vm129
      %v131 = vsel %vm130, %v123, %v127
      %v132 = vand.u32 2147483647, %v122
      %vm133 = vcmp.eq.f32.partialorder %v132, 8.507059e+37
      %v134 = vand.u32 %v122, 2147483648
      %v135 = vor.u32 1.1754944e-38, %v134
      %v136 = vsel %vm133, %v135, %v131
      %v137 = vmul.f32 %v120, %v136
      %138 = vst.msk [vmem:[%s3] sm:$0xff] %vm109, %v137
    $region33: #{tpu_custom_call.1} parent=1 // pred_fallthru
      _
    // Predicated region
    $region34: #{tpu_custom_call.1} parent=1 // pred_check
      _
    $region35: #{tpu_custom_call.1} parent=1 // pred_check_branch
      %140 = sbr.rel (0) target = $region37
    $region36: #{tpu_custom_call.1} parent=1 // pred_region
      _
    $region37: #{tpu_custom_call.1} parent=1 // pred_fallthru
      _
    // Predicated region
    $region38: #{tpu_custom_call.1} parent=1 // pred_check
      _
    $region39: #{tpu_custom_call.1} parent=1 // pred_check_branch
      %142 = sbr.rel (0) target = $region41
    $region40: #{tpu_custom_call.1} parent=1 // pred_region
      _
    $region41: #{tpu_custom_call.1} parent=1 // pred_fallthru
      _
    %143 = vsyncpa [#allocation5], 1
    %144 = vsyncpa [#allocation7], 1

</llo_original>
